<compile_context>
chip_gen: v7x
topology: tpu7x:2x2x1
jax: 0.10.0
libtpu: 0.0.40
codegen_flags: <defaults>
</compile_context>

<pallas_src>
import functools

import jax
import jax.numpy as jnp
from jax.experimental import pallas as pl
from jax.experimental.pallas import tpu as pltpu


def _round_up(n, m):
    return ((n + m - 1) // m) * m


def _mlp_kernel(n_layers,
                x_ref, w_in_ref, b_in_ref, w_h_ref, b_h_ref, w_out_ref, b_out_ref,
                o_ref):
    """One batch tile of the full MLP, entirely in VMEM.

    Shapes (already [in, out] layout and feature-padded by the wrapper):
      x_ref    : (TB, D_in)       act dtype (f32 or bf16)
      w_in_ref : (D_in, Hp)       weight dtype      b_in_ref : (1, Hp)      act dtype
      w_h_ref  : (L_eff, Hp, Hp)  weight dtype      b_h_ref  : (L_eff,1,Hp) act dtype
      w_out_ref: (Hp, Op)         weight dtype      b_out_ref: (1, Op)      f32
      o_ref    : (TB, Op)         out dtype
    """
    wdt = w_in_ref.dtype   # MXU operand dtype (bf16 or f32)
    adt = b_in_ref.dtype   # activation dtype for bias-add / tanh (bf16 on v6e/v7x)

    def mm(a, w):
        # f32 MXU accumulation in every path.  astype is a no-op when dtypes match.
        return jnp.dot(a.astype(wdt), w, preferred_element_type=jnp.float32)

    # Input layer: Linear, NO activation (matches the PyTorch forward).
    h = mm(x_ref[...], w_in_ref[...]).astype(adt) + b_in_ref[...]

    # Hidden layers: tanh(Linear(h)).  Fully unrolled — n_layers is a small static
    # Python int, so the scheduler can overlap layer i+1 loads with layer i compute.
    for i in range(n_layers):
        z = mm(h, w_h_ref[i]).astype(adt) + b_h_ref[i]
        h = jnp.tanh(z)          # bf16 tanh on v6e/v7x path, f32 on the exact path

    # Output layer: Linear, no activation.  f32 accumulate + f32 bias, cast at store.
    o_ref[...] = (mm(h, w_out_ref[...]) + b_out_ref[...]).astype(o_ref.dtype)


def init_params(key, input_dim, hidden_dim, layer_dim, output_dim):
    """PyTorch-like init U(-1/sqrt(fan_in), +1/sqrt(fan_in)), stored in [in, out] layout."""
    def linear(k, fan_in, fan_out):
        kw, kb = jax.random.split(k)
        bound = 1.0 / jnp.sqrt(fan_in)
        w = jax.random.uniform(kw, (fan_in, fan_out), jnp.float32, -bound, bound)
        b = jax.random.uniform(kb, (fan_out,), jnp.float32, -bound, bound)
        return w, b

    keys = jax.random.split(key, layer_dim + 2)
    w_in, b_in = linear(keys[0], input_dim, hidden_dim)
    w_hs, b_hs = [], []
    for i in range(layer_dim):
        w, b = linear(keys[1 + i], hidden_dim, hidden_dim)
        w_hs.append(w)
        b_hs.append(b)
    w_out, b_out = linear(keys[-1], hidden_dim, output_dim)
    return dict(
        w_in=w_in, b_in=b_in,
        w_h=(jnp.stack(w_hs, 0) if layer_dim > 0
             else jnp.zeros((0, hidden_dim, hidden_dim), jnp.float32)),
        b_h=(jnp.stack(b_hs, 0) if layer_dim > 0
             else jnp.zeros((0, hidden_dim), jnp.float32)),
        w_out=w_out, b_out=b_out,
    )


def prepare_params(params, *, weight_dtype=jnp.bfloat16, activation_dtype=None):
    """One-time padding/casting to kernel layout (call once, outside the hot path).

    Pads hidden/output feature dims up to multiples of 128 with zeros (exact math;
    do NOT pad hidden to 256 — this kernel is not MXU-bound).  `weight_dtype` sets
    the MXU operand dtype; `activation_dtype` (default = weight_dtype) sets the
    dtype used for the streamed input x, the hidden biases and the bias-add/tanh.
    Use (bf16, bf16) on v6e/v7x, (f32, f32) for exactness, (bf16, f32) on v5e.
    """
    act_dtype = jnp.dtype(activation_dtype if activation_dtype is not None
                          else weight_dtype)
    w_in, b_in = params["w_in"], params["b_in"]
    w_h, b_h = params["w_h"], params["b_h"]
    w_out, b_out = params["w_out"], params["b_out"]

    d_in, hidden = w_in.shape
    d_out = w_out.shape[1]
    layer_dim = w_h.shape[0]
    h_pad = _round_up(hidden, 128)
    o_pad = _round_up(d_out, 128)
    l_eff = max(layer_dim, 1)  # avoid zero-sized pallas_call inputs when layer_dim == 0

    w_in_p = jnp.zeros((d_in, h_pad), jnp.float32).at[:, :hidden].set(w_in)
    b_in_p = jnp.zeros((1, h_pad), jnp.float32).at[0, :hidden].set(b_in)
    w_h_p = jnp.zeros((l_eff, h_pad, h_pad), jnp.float32
                      ).at[:layer_dim, :hidden, :hidden].set(w_h)
    b_h_p = jnp.zeros((l_eff, 1, h_pad), jnp.float32).at[:layer_dim, 0, :hidden].set(b_h)
    w_out_p = jnp.zeros((h_pad, o_pad), jnp.float32).at[:hidden, :d_out].set(w_out)
    b_out_p = jnp.zeros((1, o_pad), jnp.float32).at[0, :d_out].set(b_out)

    return dict(
        w_in=w_in_p.astype(weight_dtype), b_in=b_in_p.astype(act_dtype),
        w_h=w_h_p.astype(weight_dtype), b_h=b_h_p.astype(act_dtype),
        w_out=w_out_p.astype(weight_dtype), b_out=b_out_p,      # output bias stays f32
        act_dtype=act_dtype,
        layer_dim=layer_dim, input_dim=d_in, output_dim=d_out,
        hidden_pad=h_pad, out_pad=o_pad,
    )


def mlp_forward(x, prep, *, block_rows=1024, min_tiles=2, out_dtype=None):
    """Pallas forward.  `x` is any (B, ...) tensor; flattened like nn.Flatten.

    Returns f32 (B, output_dim).  `out_dtype` controls the padded in-kernel
    writeback dtype (bf16 is nearly free accuracy-wise and halves the padded
    (TB, 128) HBM writeback on mem-bound v5e).
    """
    out_dtype = jnp.dtype(out_dtype if out_dtype is not None else jnp.float32)
    batch = x.shape[0]
    act_dtype = prep["act_dtype"]
    x_flat = x.reshape(batch, -1).astype(act_dtype)   # bf16 streaming in the bf16 path
    d_in = x_flat.shape[1]
    assert d_in == prep["input_dim"], (d_in, prep["input_dim"])

    # --- Batch tiling: balanced, sublane-aligned tiles with minimal padding, and
    # at least `min_tiles` equal grid steps when the batch allows it, so the
    # "parallel" batch axis actually shards across both TensorCores on v7x.
    block_rows = max(8, _round_up(block_rows, 8))
    n_tiles = pl.cdiv(batch, block_rows)
    if _round_up(batch, 8) >= 16:
        n_tiles = max(n_tiles, min_tiles)
    tb = min(block_rows, _round_up(pl.cdiv(batch, n_tiles), 8))
    b_pad = _round_up(batch, tb)
    if b_pad != batch:
        x_flat = jnp.pad(x_flat, ((0, b_pad - batch), (0, 0)))
    grid = (b_pad // tb,)

    h_pad, o_pad = prep["hidden_pad"], prep["out_pad"]
    l_eff = prep["w_h"].shape[0]
    kernel = functools.partial(_mlp_kernel, prep["layer_dim"])

    weight_args = (prep["w_in"], prep["b_in"], prep["w_h"], prep["b_h"],
                   prep["w_out"], prep["b_out"])
    weight_bytes = sum(int(w.nbytes) for w in weight_args)
    tile_io_bytes = 2 * (tb * d_in * jnp.dtype(act_dtype).itemsize      # x, double-buffered
                         + tb * o_pad * out_dtype.itemsize)             # out, double-buffered
    scratch_bytes = 6 * tb * h_pad * 4                                  # in-kernel h temporaries

    def resident_spec(shape, pipeline_mode):
        imap = lambda i, _nd=len(shape): (0,) * _nd
        if pipeline_mode is None:
            return pl.BlockSpec(shape, imap)
        return pl.BlockSpec(shape, imap, pipeline_mode=pipeline_mode)

    def call(weight_pipeline_mode, weight_buf_count):
        vmem_limit = int(min(64 << 20,                                  # v7x physical cap
                             max(weight_buf_count * weight_bytes
                                 + tile_io_bytes + scratch_bytes + (2 << 20),
                                 32 << 20)))
        return pl.pallas_call(
            kernel,
            out_shape=jax.ShapeDtypeStruct((b_pad, o_pad), out_dtype),
            grid=grid,
            in_specs=[
                pl.BlockSpec((tb, d_in), lambda i: (i, 0)),             # x: streamed
                resident_spec((d_in, h_pad), weight_pipeline_mode),     # weights: resident
                resident_spec((1, h_pad), weight_pipeline_mode),
                resident_spec((l_eff, h_pad, h_pad), weight_pipeline_mode),
                resident_spec((l_eff, 1, h_pad), weight_pipeline_mode),
                resident_spec((h_pad, o_pad), weight_pipeline_mode),
                resident_spec((1, o_pad), weight_pipeline_mode),
            ],
            out_specs=pl.BlockSpec((tb, o_pad), lambda i: (i, 0)),
            compiler_params=pltpu.CompilerParams(
                dimension_semantics=("parallel",),                      # megacore on v7x
                vmem_limit_bytes=vmem_limit),
        )(x_flat, *weight_args)

    try:
        # Constant index_map -> DMA'd once; single-buffering halves resident-weight VMEM.
        out = call(pl.Buffered(1), 1)
    except Exception:
        # Fallback for jax versions without BlockSpec pipeline_mode / Buffered support.
        out = call(None, 2)

    return out[:batch, :prep["output_dim"]].astype(jnp.float32)


def mlp_reference(x, params):
    """Pure-JAX reference matching the PyTorch forward exactly ([in, out] weights)."""
    h = x.reshape(x.shape[0], -1) @ params["w_in"] + params["b_in"]
    for i in range(params["w_h"].shape[0]):
        h = jnp.tanh(h @ params["w_h"][i] + params["b_h"][i])
    return h @ params["w_out"] + params["b_out"]


if __name__ == "__main__":
    # Small shapes consistent with the module (PINN-style MLP).
    batch, input_dim, hidden_dim, layer_dim, output_dim = 2, 4, 32, 2, 3

    key = jax.random.PRNGKey(0)
    k_params, k_x, k_xl = jax.random.split(key, 3)
    params = init_params(k_params, input_dim, hidden_dim, layer_dim, output_dim)
    x = jax.random.normal(k_x, (batch, input_dim), jnp.float32)
    ref = mlp_reference(x, params)

    # 1) f32 path — bit-accurate vs reference.
    prep32 = prepare_params(params, weight_dtype=jnp.float32)
    out32 = jax.block_until_ready(mlp_forward(x, prep32))
    assert out32.shape == (batch, output_dim), out32.shape
    assert jnp.allclose(out32, ref, atol=1e-5, rtol=1e-5), jnp.max(jnp.abs(out32 - ref))

    # 2) bf16 weights + bf16 activations (v6e/v7x fast path) — looser tolerance.
    prep16 = prepare_params(params, weight_dtype=jnp.bfloat16)
    out16 = jax.block_until_ready(mlp_forward(x, prep16))
    assert jnp.allclose(out16, ref, atol=3e-2, rtol=3e-2), jnp.max(jnp.abs(out16 - ref))

    # 3) multi-tile batch grid with balanced tiles (300 -> 2 tiles of 152 rows).
    xl = jax.random.normal(k_xl, (300, input_dim), jnp.float32)
    outl = jax.block_until_ready(mlp_forward(xl, prep32))
    refl = mlp_reference(xl, params)
    assert outl.shape == (300, output_dim), outl.shape
    assert jnp.allclose(outl, refl, atol=1e-5, rtol=1e-5), jnp.max(jnp.abs(outl - refl))

    # 4) reduced-precision padded writeback (v5e mem-bound option), f32 result.
    outb = jax.block_until_ready(mlp_forward(xl, prep32, out_dtype=jnp.bfloat16))
    assert jnp.allclose(outb, refl, atol=2e-2, rtol=2e-2), jnp.max(jnp.abs(outb - refl))

    # 5) layer_dim == 0 edge case (dummy hidden stack never touched).
    params0 = init_params(k_params, input_dim, hidden_dim, 0, output_dim)
    prep0 = prepare_params(params0, weight_dtype=jnp.float32)
    out0 = jax.block_until_ready(mlp_forward(x, prep0))
    ref0 = mlp_reference(x, params0)
    assert jnp.allclose(out0, ref0, atol=1e-5, rtol=1e-5), jnp.max(jnp.abs(out0 - ref0))

    print("KERNEL_OK")
</pallas_src>

<mosaic_0001>
module attributes {stable_mosaic.version = 11 : i64} {
  func.func @_mlp_kernel(%arg0: i32, %arg1: memref<8x4xf32, #tpu.memory_space<vmem>>, %arg2: memref<4x128xf32, #tpu.memory_space<vmem>>, %arg3: memref<1x128xf32, #tpu.memory_space<vmem>>, %arg4: memref<2x128x128xf32, #tpu.memory_space<vmem>>, %arg5: memref<2x1x128xf32, #tpu.memory_space<vmem>>, %arg6: memref<128x128xf32, #tpu.memory_space<vmem>>, %arg7: memref<1x128xf32, #tpu.memory_space<vmem>>, %arg8: memref<8x128xf32, #tpu.memory_space<vmem>>) attributes {dimension_semantics = [#tpu.dimension_semantics<parallel>], iteration_bounds = array<i64: 1>, scalar_prefetch = 0 : i64, scratch_operands = 0 : i64, tpu.core_type = #tpu.core_type<tc>, window_params = [{transform_indices = @transform_0, window_bounds = array<i64: 8, 4>}, {pipeline_mode = #tpu.pipeline_mode<synchronous>, transform_indices = @transform_1, window_bounds = array<i64: 4, 128>}, {pipeline_mode = #tpu.pipeline_mode<synchronous>, transform_indices = @transform_2, window_bounds = array<i64: 1, 128>}, {pipeline_mode = #tpu.pipeline_mode<synchronous>, transform_indices = @transform_3, window_bounds = array<i64: 2, 128, 128>}, {pipeline_mode = #tpu.pipeline_mode<synchronous>, transform_indices = @transform_4, window_bounds = array<i64: 2, 1, 128>}, {pipeline_mode = #tpu.pipeline_mode<synchronous>, transform_indices = @transform_5, window_bounds = array<i64: 128, 128>}, {pipeline_mode = #tpu.pipeline_mode<synchronous>, transform_indices = @transform_6, window_bounds = array<i64: 1, 128>}, {transform_indices = @transform_7, window_bounds = array<i64: 8, 128>}]} {
    %c0 = arith.constant 0 : index
    %c0_0 = arith.constant 0 : index
    %0 = vector.load %arg1[%c0, %c0_0] : memref<8x4xf32, #tpu.memory_space<vmem>>, vector<8x4xf32>
    %c0_1 = arith.constant 0 : index
    %c0_2 = arith.constant 0 : index
    %1 = vector.load %arg2[%c0_1, %c0_2] : memref<4x128xf32, #tpu.memory_space<vmem>>, vector<4x128xf32>
    %cst = arith.constant dense<0.000000e+00> : vector<8x128xf32>
    %2 = tpu.matmul %0, %1, %cst {dimension_numbers = #tpu.dot_dimension_numbers<[1], [0], [0], [1], [0, 0, 1, 1], [], []>} : vector<8x4xf32>, vector<4x128xf32>, vector<8x128xf32> -> vector<8x128xf32>
    %c0_3 = arith.constant 0 : index
    %c0_4 = arith.constant 0 : index
    %3 = vector.load %arg3[%c0_3, %c0_4] : memref<1x128xf32, #tpu.memory_space<vmem>>, vector<1x128xf32>
    %4 = vector.broadcast %3 : vector<1x128xf32> to vector<8x128xf32>
    %5 = arith.addf %2, %4 : vector<8x128xf32>
    %c0_5 = arith.constant 0 : index
    %c0_6 = arith.constant 0 : index
    %c0_7 = arith.constant 0 : index
    %6 = vector.load %arg4[%c0_5, %c0_6, %c0_7] : memref<2x128x128xf32, #tpu.memory_space<vmem>>, vector<1x128x128xf32>
    %7 = vector.shape_cast %6 : vector<1x128x128xf32> to vector<128x128xf32>
    %cst_8 = arith.constant dense<0.000000e+00> : vector<8x128xf32>
    %8 = tpu.matmul %5, %7, %cst_8 {dimension_numbers = #tpu.dot_dimension_numbers<[1], [0], [0], [1], [0, 0, 1, 1], [], []>} : vector<8x128xf32>, vector<128x128xf32>, vector<8x128xf32> -> vector<8x128xf32>
    %c0_9 = arith.constant 0 : index
    %c0_10 = arith.constant 0 : index
    %c0_11 = arith.constant 0 : index
    %9 = vector.load %arg5[%c0_9, %c0_10, %c0_11] : memref<2x1x128xf32, #tpu.memory_space<vmem>>, vector<1x1x128xf32>
    %10 = vector.shape_cast %9 : vector<1x1x128xf32> to vector<1x128xf32>
    %11 = vector.broadcast %10 : vector<1x128xf32> to vector<8x128xf32>
    %12 = arith.addf %8, %11 : vector<8x128xf32>
    %13 = math.tanh %12 : vector<8x128xf32>
    %c1 = arith.constant 1 : index
    %c0_12 = arith.constant 0 : index
    %c0_13 = arith.constant 0 : index
    %14 = vector.load %arg4[%c1, %c0_12, %c0_13] : memref<2x128x128xf32, #tpu.memory_space<vmem>>, vector<1x128x128xf32>
    %15 = vector.shape_cast %14 : vector<1x128x128xf32> to vector<128x128xf32>
    %cst_14 = arith.constant dense<0.000000e+00> : vector<8x128xf32>
    %16 = tpu.matmul %13, %15, %cst_14 {dimension_numbers = #tpu.dot_dimension_numbers<[1], [0], [0], [1], [0, 0, 1, 1], [], []>} : vector<8x128xf32>, vector<128x128xf32>, vector<8x128xf32> -> vector<8x128xf32>
    %c1_15 = arith.constant 1 : index
    %c0_16 = arith.constant 0 : index
    %c0_17 = arith.constant 0 : index
    %17 = vector.load %arg5[%c1_15, %c0_16, %c0_17] : memref<2x1x128xf32, #tpu.memory_space<vmem>>, vector<1x1x128xf32>
    %18 = vector.shape_cast %17 : vector<1x1x128xf32> to vector<1x128xf32>
    %19 = vector.broadcast %18 : vector<1x128xf32> to vector<8x128xf32>
    %20 = arith.addf %16, %19 : vector<8x128xf32>
    %21 = math.tanh %20 : vector<8x128xf32>
    %c0_18 = arith.constant 0 : index
    %c0_19 = arith.constant 0 : index
    %22 = vector.load %arg6[%c0_18, %c0_19] : memref<128x128xf32, #tpu.memory_space<vmem>>, vector<128x128xf32>
    %cst_20 = arith.constant dense<0.000000e+00> : vector<8x128xf32>
    %23 = tpu.matmul %21, %22, %cst_20 {dimension_numbers = #tpu.dot_dimension_numbers<[1], [0], [0], [1], [0, 0, 1, 1], [], []>} : vector<8x128xf32>, vector<128x128xf32>, vector<8x128xf32> -> vector<8x128xf32>
    %c0_21 = arith.constant 0 : index
    %c0_22 = arith.constant 0 : index
    %24 = vector.load %arg7[%c0_21, %c0_22] : memref<1x128xf32, #tpu.memory_space<vmem>>, vector<1x128xf32>
    %25 = vector.broadcast %24 : vector<1x128xf32> to vector<8x128xf32>
    %26 = arith.addf %23, %25 : vector<8x128xf32>
    %c0_23 = arith.constant 0 : index
    %c0_24 = arith.constant 0 : index
    %27 = vector.load %arg8[%c0_23, %c0_24] : memref<8x128xf32, #tpu.memory_space<vmem>>, vector<8x128xf32>
    tpu.vector_store %arg8[%c0_23, %c0_24], %26 {strides = array<i32>} : memref<8x128xf32, #tpu.memory_space<vmem>>, vector<8x128xf32>,
    return
  }
  func.func @transform_0(%arg0: i32) -> (i32, i32) {
    %c0_i32 = arith.constant 0 : i32
    %c0_i32_0 = arith.constant 0 : i32
    return %arg0, %c0_i32 : i32, i32
  }
  func.func @transform_1(%arg0: i32) -> (i32, i32) {
    %c0_i32 = arith.constant 0 : i32
    %c0_i32_0 = arith.constant 0 : i32
    %c0_i32_1 = arith.constant 0 : i32
    return %c0_i32, %c0_i32_0 : i32, i32
  }
  func.func @transform_2(%arg0: i32) -> (i32, i32) {
    %c0_i32 = arith.constant 0 : i32
    %c0_i32_0 = arith.constant 0 : i32
    %c0_i32_1 = arith.constant 0 : i32
    return %c0_i32, %c0_i32_0 : i32, i32
  }
  func.func @transform_3(%arg0: i32) -> (i32, i32, i32) {
    %c0_i32 = arith.constant 0 : i32
    %c0_i32_0 = arith.constant 0 : i32
    %c0_i32_1 = arith.constant 0 : i32
    %c0_i32_2 = arith.constant 0 : i32
    return %c0_i32, %c0_i32_0, %c0_i32_1 : i32, i32, i32
  }
  func.func @transform_4(%arg0: i32) -> (i32, i32, i32) {
    %c0_i32 = arith.constant 0 : i32
    %c0_i32_0 = arith.constant 0 : i32
    %c0_i32_1 = arith.constant 0 : i32
    %c0_i32_2 = arith.constant 0 : i32
    return %c0_i32, %c0_i32_0, %c0_i32_1 : i32, i32, i32
  }
  func.func @transform_5(%arg0: i32) -> (i32, i32) {
    %c0_i32 = arith.constant 0 : i32
    %c0_i32_0 = arith.constant 0 : i32
    %c0_i32_1 = arith.constant 0 : i32
    return %c0_i32, %c0_i32_0 : i32, i32
  }
  func.func @transform_6(%arg0: i32) -> (i32, i32) {
    %c0_i32 = arith.constant 0 : i32
    %c0_i32_0 = arith.constant 0 : i32
    %c0_i32_1 = arith.constant 0 : i32
    return %c0_i32, %c0_i32_0 : i32, i32
  }
  func.func @transform_7(%arg0: i32) -> (i32, i32) {
    %c0_i32 = arith.constant 0 : i32
    %c0_i32_0 = arith.constant 0 : i32
    return %arg0, %c0_i32 : i32, i32
  }
}

module attributes {stable_mosaic.version = 11 : i64} {
  func.func @_mlp_kernel(%arg0: i32, %arg1: memref<8x4xf32, #tpu.memory_space<vmem>>, %arg2: memref<4x128xf32, #tpu.memory_space<vmem>>, %arg3: memref<1x128xf32, #tpu.memory_space<vmem>>, %arg4: memref<2x128x128xf32, #tpu.memory_space<vmem>>, %arg5: memref<2x1x128xf32, #tpu.memory_space<vmem>>, %arg6: memref<128x128xf32, #tpu.memory_space<vmem>>, %arg7: memref<1x128xf32, #tpu.memory_space<vmem>>, %arg8: memref<8x128xf32, #tpu.memory_space<vmem>>) attributes {dimension_semantics = [#tpu.dimension_semantics<parallel>], iteration_bounds = array<i64: 1>, scalar_prefetch = 0 : i64, scratch_operands = 0 : i64, tpu.core_type = #tpu.core_type<tc>, window_params = [{transform_indices = @transform_0, window_bounds = array<i64: 8, 4>}, {pipeline_mode = #tpu.pipeline_mode<synchronous>, transform_indices = @transform_1, window_bounds = array<i64: 4, 128>}, {pipeline_mode = #tpu.pipeline_mode<synchronous>, transform_indices = @transform_2, window_bounds = array<i64: 1, 128>}, {pipeline_mode = #tpu.pipeline_mode<synchronous>, transform_indices = @transform_3, window_bounds = array<i64: 2, 128, 128>}, {pipeline_mode = #tpu.pipeline_mode<synchronous>, transform_indices = @transform_4, window_bounds = array<i64: 2, 1, 128>}, {pipeline_mode = #tpu.pipeline_mode<synchronous>, transform_indices = @transform_5, window_bounds = array<i64: 128, 128>}, {pipeline_mode = #tpu.pipeline_mode<synchronous>, transform_indices = @transform_6, window_bounds = array<i64: 1, 128>}, {transform_indices = @transform_7, window_bounds = array<i64: 8, 128>}]} {
    %c0 = arith.constant 0 : index
    %c0_0 = arith.constant 0 : index
    %0 = vector.load %arg1[%c0, %c0_0] : memref<8x4xf32, #tpu.memory_space<vmem>>, vector<8x4xf32>
    %c0_1 = arith.constant 0 : index
    %c0_2 = arith.constant 0 : index
    %1 = vector.load %arg2[%c0_1, %c0_2] : memref<4x128xf32, #tpu.memory_space<vmem>>, vector<4x128xf32>
    %cst = arith.constant dense<0.000000e+00> : vector<8x128xf32>
    %2 = tpu.matmul %0, %1, %cst {dimension_numbers = #tpu.dot_dimension_numbers<[1], [0], [0], [1], [0, 0, 1, 1], [], []>} : vector<8x4xf32>, vector<4x128xf32>, vector<8x128xf32> -> vector<8x128xf32>
    %c0_3 = arith.constant 0 : index
    %c0_4 = arith.constant 0 : index
    %3 = vector.load %arg3[%c0_3, %c0_4] : memref<1x128xf32, #tpu.memory_space<vmem>>, vector<1x128xf32>
    %4 = vector.broadcast %3 : vector<1x128xf32> to vector<8x128xf32>
    %5 = arith.addf %2, %4 : vector<8x128xf32>
    %c0_5 = arith.constant 0 : index
    %c0_6 = arith.constant 0 : index
    %c0_7 = arith.constant 0 : index
    %6 = vector.load %arg4[%c0_5, %c0_6, %c0_7] : memref<2x128x128xf32, #tpu.memory_space<vmem>>, vector<1x128x128xf32>
    %7 = vector.shape_cast %6 : vector<1x128x128xf32> to vector<128x128xf32>
    %cst_8 = arith.constant dense<0.000000e+00> : vector<8x128xf32>
    %8 = tpu.matmul %5, %7, %cst_8 {dimension_numbers = #tpu.dot_dimension_numbers<[1], [0], [0], [1], [0, 0, 1, 1], [], []>} : vector<8x128xf32>, vector<128x128xf32>, vector<8x128xf32> -> vector<8x128xf32>
    %c0_9 = arith.constant 0 : index
    %c0_10 = arith.constant 0 : index
    %c0_11 = arith.constant 0 : index
    %9 = vector.load %arg5[%c0_9, %c0_10, %c0_11] : memref<2x1x128xf32, #tpu.memory_space<vmem>>, vector<1x1x128xf32>
    %10 = vector.shape_cast %9 : vector<1x1x128xf32> to vector<1x128xf32>
    %11 = vector.broadcast %10 : vector<1x128xf32> to vector<8x128xf32>
    %12 = arith.addf %8, %11 : vector<8x128xf32>
    %13 = math.tanh %12 : vector<8x128xf32>
    %c1 = arith.constant 1 : index
    %c0_12 = arith.constant 0 : index
    %c0_13 = arith.constant 0 : index
    %14 = vector.load %arg4[%c1, %c0_12, %c0_13] : memref<2x128x128xf32, #tpu.memory_space<vmem>>, vector<1x128x128xf32>
    %15 = vector.shape_cast %14 : vector<1x128x128xf32> to vector<128x128xf32>
    %cst_14 = arith.constant dense<0.000000e+00> : vector<8x128xf32>
    %16 = tpu.matmul %13, %15, %cst_14 {dimension_numbers = #tpu.dot_dimension_numbers<[1], [0], [0], [1], [0, 0, 1, 1], [], []>} : vector<8x128xf32>, vector<128x128xf32>, vector<8x128xf32> -> vector<8x128xf32>
    %c1_15 = arith.constant 1 : index
    %c0_16 = arith.constant 0 : index
    %c0_17 = arith.constant 0 : index
    %17 = vector.load %arg5[%c1_15, %c0_16, %c0_17] : memref<2x1x128xf32, #tpu.memory_space<vmem>>, vector<1x1x128xf32>
    %18 = vector.shape_cast %17 : vector<1x1x128xf32> to vector<1x128xf32>
    %19 = vector.broadcast %18 : vector<1x128xf32> to vector<8x128xf32>
    %20 = arith.addf %16, %19 : vector<8x128xf32>
    %21 = math.tanh %20 : vector<8x128xf32>
    %c0_18 = arith.constant 0 : index
    %c0_19 = arith.constant 0 : index
    %22 = vector.load %arg6[%c0_18, %c0_19] : memref<128x128xf32, #tpu.memory_space<vmem>>, vector<128x128xf32>
    %cst_20 = arith.constant dense<0.000000e+00> : vector<8x128xf32>
    %23 = tpu.matmul %21, %22, %cst_20 {dimension_numbers = #tpu.dot_dimension_numbers<[1], [0], [0], [1], [0, 0, 1, 1], [], []>} : vector<8x128xf32>, vector<128x128xf32>, vector<8x128xf32> -> vector<8x128xf32>
    %c0_21 = arith.constant 0 : index
    %c0_22 = arith.constant 0 : index
    %24 = vector.load %arg7[%c0_21, %c0_22] : memref<1x128xf32, #tpu.memory_space<vmem>>, vector<1x128xf32>
    %25 = vector.broadcast %24 : vector<1x128xf32> to vector<8x128xf32>
    %26 = arith.addf %23, %25 : vector<8x128xf32>
    %c0_23 = arith.constant 0 : index
    %c0_24 = arith.constant 0 : index
    %27 = vector.load %arg8[%c0_23, %c0_24] : memref<8x128xf32, #tpu.memory_space<vmem>>, vector<8x128xf32>
    tpu.vector_store %arg8[%c0_23, %c0_24], %26 {strides = array<i32>} : memref<8x128xf32, #tpu.memory_space<vmem>>, vector<8x128xf32>,
    return
  }
  func.func @transform_0(%arg0: i32) -> (i32, i32) {
    %c0_i32 = arith.constant 0 : i32
    %c0_i32_0 = arith.constant 0 : i32
    return %arg0, %c0_i32 : i32, i32
  }
  func.func @transform_1(%arg0: i32) -> (i32, i32) {
    %c0_i32 = arith.constant 0 : i32
    %c0_i32_0 = arith.constant 0 : i32
    %c0_i32_1 = arith.constant 0 : i32
    return %c0_i32, %c0_i32_0 : i32, i32
  }
  func.func @transform_2(%arg0: i32) -> (i32, i32) {
    %c0_i32 = arith.constant 0 : i32
    %c0_i32_0 = arith.constant 0 : i32
    %c0_i32_1 = arith.constant 0 : i32
    return %c0_i32, %c0_i32_0 : i32, i32
  }
  func.func @transform_3(%arg0: i32) -> (i32, i32, i32) {
    %c0_i32 = arith.constant 0 : i32
    %c0_i32_0 = arith.constant 0 : i32
    %c0_i32_1 = arith.constant 0 : i32
    %c0_i32_2 = arith.constant 0 : i32
    return %c0_i32, %c0_i32_0, %c0_i32_1 : i32, i32, i32
  }
  func.func @transform_4(%arg0: i32) -> (i32, i32, i32) {
    %c0_i32 = arith.constant 0 : i32
    %c0_i32_0 = arith.constant 0 : i32
    %c0_i32_1 = arith.constant 0 : i32
    %c0_i32_2 = arith.constant 0 : i32
    return %c0_i32, %c0_i32_0, %c0_i32_1 : i32, i32, i32
  }
  func.func @transform_5(%arg0: i32) -> (i32, i32) {
    %c0_i32 = arith.constant 0 : i32
    %c0_i32_0 = arith.constant 0 : i32
    %c0_i32_1 = arith.constant 0 : i32
    return %c0_i32, %c0_i32_0 : i32, i32
  }
  func.func @transform_6(%arg0: i32) -> (i32, i32) {
    %c0_i32 = arith.constant 0 : i32
    %c0_i32_0 = arith.constant 0 : i32
    %c0_i32_1 = arith.constant 0 : i32
    return %c0_i32, %c0_i32_0 : i32, i32
  }
  func.func @transform_7(%arg0: i32) -> (i32, i32) {
    %c0_i32 = arith.constant 0 : i32
    %c0_i32_0 = arith.constant 0 : i32
    return %arg0, %c0_i32 : i32, i32
  }
}

</mosaic_0001>

<llo_original>
// kernel: tpu_custom_call.1
$region0: #{tpu_custom_call.1}
  #allocation0 [shape = 'u32[]', space=smem, size = 0x4, offset = 0x4, fixed_abs, tag = 'smem constant byte address 0x4 - core index']
  #allocation1 [shape = 'u32[144,128]{1,0:T(1,128)}', space=vmem, size = 0x12000, scoped, tag = 'internal scratch']
  %s0 = inlined_call_operand.vmem [shape: f32[8,4], index: 0, kind: input, shape index: {}]
  %s1 = inlined_call_operand.vmem [shape: f32[4,128], index: 1, kind: input, shape index: {}]
  %s2 = inlined_call_operand.vmem [shape: f32[1,128], index: 2, kind: input, shape index: {}]
  %s3 = inlined_call_operand.hbm [shape: f32[2,128,128], index: 3, kind: input, shape index: {}]
  %s4 = inlined_call_operand.vmem [shape: f32[2,1,128], index: 4, kind: input, shape index: {}]
  %s5 = inlined_call_operand.hbm [shape: f32[128,128], index: 5, kind: input, shape index: {}]
  %s6 = inlined_call_operand.vmem [shape: f32[1,128], index: 6, kind: input, shape index: {}]
  %s7 = inlined_call_operand.hbm [shape: f32[8,128], index: 7, kind: output, shape index: {}]
  %s8 = sld [smem:[#allocation0]]
  $region46: #{tpu_custom_call.1} parent=0
    _
  %s10 = ssub.s32 1, %s8
  %s11 = scalar_select 0, %s10, %s8
  $region1: #{tpu_custom_call.1} parent=0
    #allocation2 [shape = 'u8[131072]{0}', space=vmem, size = 0x20000, scoped, tag = 'input window, operand 3, single buffered']
    #allocation3 [shape = 's32[1]{0}', space=sflag, size = 0x4, scoped, tag = 'scoped memory for tpu_custom_call.1']
    #allocation4 [shape = 's32[1]{0}', space=sflag, size = 0x4, scoped, tag = 'scoped memory for tpu_custom_call.1']
    #allocation5 [shape = 'u8[65536]{0}', space=vmem, size = 0x10000, scoped, tag = 'input window, operand 5, single buffered']
    #allocation6 [shape = 's32[1]{0}', space=sflag, size = 0x4, scoped, tag = 'scoped memory for tpu_custom_call.1']
    #allocation7 [shape = 'u8[4096]{0}', space=vmem, size = 0x1000, scoped, tag = 'output window, operand 0, single buffered']
    %12 = vsyncpa [#allocation3], 0
    %13 = vsyncpa [#allocation6], 0
    %14 = vsyncpa [#allocation4], 0
    // Predicated region
    $region2: #{tpu_custom_call.1} parent=1 // pred_check
      _
    $region3: #{tpu_custom_call.1} parent=1 // pred_check_branch
      %16 = sbr.rel (0) target = $region5
    $region4: #{tpu_custom_call.1} parent=1 // pred_region
      _
    $region5: #{tpu_custom_call.1} parent=1 // pred_fallthru
      _
    // Predicated region
    $region6: #{tpu_custom_call.1} parent=1 // pred_check
      _
    $region7: #{tpu_custom_call.1} parent=1 // pred_check_branch
      %18 = sbr.rel (0) target = $region9
    $region8: #{tpu_custom_call.1} parent=1 // pred_region
      _
    $region9: #{tpu_custom_call.1} parent=1 // pred_fallthru
      _
    // Predicated region
    $region10: #{tpu_custom_call.1} parent=1 // pred_check
      _
    $region11: #{tpu_custom_call.1} parent=1 // pred_check_branch
      %20 = sbr.rel (0) target = $region13
    $region12: #{tpu_custom_call.1} parent=1 // pred_region
      _
    $region13: #{tpu_custom_call.1} parent=1 // pred_fallthru
      _
    // Predicated region
    $region14: #{tpu_custom_call.1} parent=1 // pred_check
      _
    $region15: #{tpu_custom_call.1} parent=1 // pred_check_branch
      %22 = sbr.rel (0) target = $region17
    $region16: #{tpu_custom_call.1} parent=1 // pred_region
      %s24 = ssub.s32 4096, 4096
      %25 = vsyncadd [#allocation3], %s24
      %s26 = sshll.u32 [#allocation2], 4
      %s27 = int_to_ptr.vmem [resolvable:$true] %s26
      %32 = dma.hbm_to_vmem [thread:$0]  %s3, 4096, %s27, [#allocation3], 128, 128, 8
    $region17: #{tpu_custom_call.1} parent=1 // pred_fallthru
      _
    // Predicated region
    $region18: #{tpu_custom_call.1} parent=1 // pred_check
      _
    $region19: #{tpu_custom_call.1} parent=1 // pred_check_branch
      %34 = sbr.rel (0) target = $region21
    $region20: #{tpu_custom_call.1} parent=1 // pred_region
      _
    $region21: #{tpu_custom_call.1} parent=1 // pred_fallthru
      _
    // Predicated region
    $region22: #{tpu_custom_call.1} parent=1 // pred_check
      _
    $region23: #{tpu_custom_call.1} parent=1 // pred_check_branch
      %36 = sbr.rel (0) target = $region25
    $region24: #{tpu_custom_call.1} parent=1 // pred_region
      %s38 = ssub.s32 2048, 2048
      %39 = vsyncadd [#allocation6], %s38
      %s40 = sshll.u32 [#allocation5], 4
      %s41 = int_to_ptr.vmem [resolvable:$true] %s40
      %46 = dma.hbm_to_vmem [thread:$0]  %s5, 2048, %s41, [#allocation6], 128, 128, 8
    $region25: #{tpu_custom_call.1} parent=1 // pred_fallthru
      _
    // Predicated region
    $region26: #{tpu_custom_call.1} parent=1 // pred_check
      _
    $region27: #{tpu_custom_call.1} parent=1 // pred_check_branch
      %48 = sbr.rel (0) target = $region29
    $region28: #{tpu_custom_call.1} parent=1 // pred_region
      _
    $region29: #{tpu_custom_call.1} parent=1 // pred_fallthru
      _
    // Predicated region
    $region30: #{tpu_custom_call.1} parent=1 // pred_check
      _
    $region31: #{tpu_custom_call.1} parent=1 // pred_check_branch
      %50 = sbr.rel (0) target = $region33
    $region32: #{tpu_custom_call.1} parent=1 // pred_region
      %51 = dma.done [#allocation3], 4096
    $region33: #{tpu_custom_call.1} parent=1 // pred_fallthru
      _
    // Predicated region
    $region34: #{tpu_custom_call.1} parent=1 // pred_check
      _
    $region35: #{tpu_custom_call.1} parent=1 // pred_check_branch
      %53 = sbr.rel (0) target = $region37
    $region36: #{tpu_custom_call.1} parent=1 // pred_region
      %54 = dma.done [#allocation6], 2048
    $region37: #{tpu_custom_call.1} parent=1 // pred_fallthru
      _
    %v55 = vld [vmem:[%s0] sm:$0xff]
    %v56 = vld [vmem:[%s1] sm:$0xf]
    %v57 = vld [vmem:[%s2] sm:$0x1]
    %v59 = vlaneseq
    %v60 = vshrl.u32 %v59, 7
    %v61 = vsub.s32 0, %v60
    %v62 = vrot.slane %v57, %v61
    %vm64 = vcmask 31744
    %v66 = vsel %vm64, %v55, 0
    %vm68 = vcmask 1043456
    %v70 = vsel %vm68, %v56, 0
    %72 = vmatprep.subr.mxu0 0.0
    %73 = vmatpush1.msra.mxu0 %v70
    %74 = vmatprep.subr.mxu0 0.0
    %75 = vmatpush1.msra.mxu0 0.0
    %76 = vmatprep.subr.mxu0 0.0
    %77 = vmatpush1.msra.mxu0 0.0
    %78 = vmatprep.subr.mxu0 0.0
    %79 = vmatpush1.msra.mxu0 0.0
    %80 = vmatprep.subr.mxu0 0.0
    %81 = vmatpush1.msra.mxu0 0.0
    %82 = vmatprep.subr.mxu0 0.0
    %83 = vmatpush1.msra.mxu0 0.0
    %84 = vmatprep.subr.mxu0 0.0
    %85 = vmatpush1.msra.mxu0 0.0
    %86 = vmatprep.subr.mxu0 0.0
    %87 = vmatpush1.msra.mxu0 0.0
    %88 = vmatprep.subr.mxu0 0.0
    %89 = vmatpush1.msra.mxu0 0.0
    %90 = vmatprep.subr.mxu0 0.0
    %91 = vmatpush1.msra.mxu0 0.0
    %92 = vmatprep.subr.mxu0 0.0
    %93 = vmatpush1.msra.mxu0 0.0
    %94 = vmatprep.subr.mxu0 0.0
    %95 = vmatpush1.msra.mxu0 0.0
    %96 = vmatprep.subr.mxu0 0.0
    %97 = vmatpush1.msra.mxu0 0.0
    %98 = vmatprep.subr.mxu0 0.0
    %99 = vmatpush1.msra.mxu0 0.0
    %100 = vmatprep.subr.mxu0 0.0
    %101 = vmatpush1.msra.mxu0 0.0
    %102 = vmatprep.subr.mxu0 0.0
    %103 = vmatpush1.msra.mxu0 0.0
    %104 = vmatprep.subr.mxu0 0.0
    %105 = vmatpush1.msra.mxu0 0.0
    %106 = vmatprep.subr.mxu0 0.0
    %107 = vmatpush1.msra.mxu0 0.0
    %108 = vmatprep.subr.mxu0 0.0
    %109 = vmatpush1.msra.mxu0 0.0
    %110 = vmatprep.subr.mxu0 0.0
    %111 = vmatpush1.msra.mxu0 0.0
    %112 = vmatprep.subr.mxu0 0.0
    %113 = vmatpush1.msra.mxu0 0.0
    %114 = vmatprep.subr.mxu0 0.0
    %115 = vmatpush1.msra.mxu0 0.0
    %116 = vmatprep.subr.mxu0 0.0
    %117 = vmatpush1.msra.mxu0 0.0
    %118 = vmatprep.subr.mxu0 0.0
    %119 = vmatpush1.msra.mxu0 0.0
    %120 = vmatprep.subr.mxu0 0.0
    %121 = vmatpush1.msra.mxu0 0.0
    %122 = vmatprep.subr.mxu0 0.0
    %123 = vmatpush1.msra.mxu0 0.0
    %124 = vmatprep.subr.mxu0 0.0
    %125 = vmatpush1.msra.mxu0 0.0
    %126 = vmatprep.subr.mxu0 0.0
    %127 = vmatpush1.msra.mxu0 0.0
    %128 = vmatprep.subr.mxu0 0.0
    %129 = vmatpush1.msra.mxu0 0.0
    %130 = vmatprep.subr.mxu0 0.0
    %131 = vmatpush1.msra.mxu0 0.0
    %132 = vmatprep.subr.mxu0 0.0
    %133 = vmatpush1.msra.mxu0 0.0
    %134 = vmatprep.subr.mxu0 0.0
    %135 = vmatpush1.msra.mxu0 0.0
    %136 = vmatprep.mubr.f32.mxu0 0.0
    %137 = vmatmul.mubr.f32.gmra.mrb[0].mxu0 %v66
    %v138 = vpop.f32.mrb[0].mxu0
    %v139 = vadd.f32 %v62, %v138
    %v140 = vpop.f32.mrb[0].mxu0
    %141 = vdwg.mxu0
    %v142 = vld [vmem:[#allocation2] sm:$0xff]
    %v143 = vld [vmem:[#allocation2 + $0x8] sm:$0xff]
    %v144 = vld [vmem:[#allocation2 + $0x10] sm:$0xff]
    %v145 = vld [vmem:[#allocation2 + $0x18] sm:$0xff]
    %v146 = vld [vmem:[#allocation2 + $0x20] sm:$0xff]
    %v147 = vld [vmem:[#allocation2 + $0x28] sm:$0xff]
    %v148 = vld [vmem:[#allocation2 + $0x30] sm:$0xff]
    %v149 = vld [vmem:[#allocation2 + $0x38] sm:$0xff]
    %v150 = vld [vmem:[#allocation2 + $0x40] sm:$0xff]
    %v151 = vld [vmem:[#allocation2 + $0x48] sm:$0xff]
    %v152 = vld [vmem:[#allocation2 + $0x50] sm:$0xff]
    %v153 = vld [vmem:[#allocation2 + $0x58] sm:$0xff]
    %v154 = vld [vmem:[#allocation2 + $0x60] sm:$0xff]
    %v155 = vld [vmem:[#allocation2 + $0x68] sm:$0xff]
    %v156 = vld [vmem:[#allocation2 + $0x70] sm:$0xff]
    %v157 = vld [vmem:[#allocation2 + $0x78] sm:$0xff]
    %v158 = vld [vmem:[%s4] sm:$0x1]
    %v160 = vlaneseq
    %v161 = vshrl.u32 %v160, 7
    %v162 = vsub.s32 0, %v161
    %v163 = vrot.slane %v158, %v162
    %165 = vmatprep.subr.mxu0 0.0
    %166 = vmatpush1.msra.mxu0 %v142
    %167 = vmatprep.subr.mxu0 0.0
    %168 = vmatpush1.msra.mxu0 %v143
    %169 = vmatprep.subr.mxu0 0.0
    %170 = vmatpush1.msra.mxu0 %v144
    %171 = vmatprep.subr.mxu0 0.0
    %172 = vmatpush1.msra.mxu0 %v145
    %173 = vmatprep.subr.mxu0 0.0
    %174 = vmatpush1.msra.mxu0 %v146
    %175 = vmatprep.subr.mxu0 0.0
    %176 = vmatpush1.msra.mxu0 %v147
    %177 = vmatprep.subr.mxu0 0.0
    %178 = vmatpush1.msra.mxu0 %v148
    %179 = vmatprep.subr.mxu0 0.0
    %180 = vmatpush1.msra.mxu0 %v149
    %181 = vmatprep.subr.mxu0 0.0
    %182 = vmatpush1.msra.mxu0 %v150
    %183 = vmatprep.subr.mxu0 0.0
    %184 = vmatpush1.msra.mxu0 %v151
    %185 = vmatprep.subr.mxu0 0.0
    %186 = vmatpush1.msra.mxu0 %v152
    %187 = vmatprep.subr.mxu0 0.0
    %188 = vmatpush1.msra.mxu0 %v153
    %189 = vmatprep.subr.mxu0 0.0
    %190 = vmatpush1.msra.mxu0 %v154
    %191 = vmatprep.subr.mxu0 0.0
    %192 = vmatpush1.msra.mxu0 %v155
    %193 = vmatprep.subr.mxu0 0.0
    %194 = vmatpush1.msra.mxu0 %v156
    %195 = vmatprep.subr.mxu0 0.0
    %196 = vmatpush1.msra.mxu0 %v157
    %197 = vmatprep.subr.mxu0 0.0
    %198 = vmatpush1.msra.mxu0 0.0
    %199 = vmatprep.subr.mxu0 0.0
    %200 = vmatpush1.msra.mxu0 0.0
    %201 = vmatprep.subr.mxu0 0.0
    %202 = vmatpush1.msra.mxu0 0.0
    %203 = vmatprep.subr.mxu0 0.0
    %204 = vmatpush1.msra.mxu0 0.0
    %205 = vmatprep.subr.mxu0 0.0
    %206 = vmatpush1.msra.mxu0 0.0
    %207 = vmatprep.subr.mxu0 0.0
    %208 = vmatpush1.msra.mxu0 0.0
    %209 = vmatprep.subr.mxu0 0.0
    %210 = vmatpush1.msra.mxu0 0.0
    %211 = vmatprep.subr.mxu0 0.0
    %212 = vmatpush1.msra.mxu0 0.0
    %213 = vmatprep.subr.mxu0 0.0
    %214 = vmatpush1.msra.mxu0 0.0
    %215 = vmatprep.subr.mxu0 0.0
    %216 = vmatpush1.msra.mxu0 0.0
    %217 = vmatprep.subr.mxu0 0.0
    %218 = vmatpush1.msra.mxu0 0.0
    %219 = vmatprep.subr.mxu0 0.0
    %220 = vmatpush1.msra.mxu0 0.0
    %221 = vmatprep.subr.mxu0 0.0
    %222 = vmatpush1.msra.mxu0 0.0
    %223 = vmatprep.subr.mxu0 0.0
    %224 = vmatpush1.msra.mxu0 0.0
    %225 = vmatprep.subr.mxu0 0.0
    %226 = vmatpush1.msra.mxu0 0.0
    %227 = vmatprep.subr.mxu0 0.0
    %228 = vmatpush1.msra.mxu0 0.0
    %229 = vmatprep.mubr.f32.mxu0 0.0
    %230 = vmatmul.mubr.f32.gmra.mrb[0].mxu0 %v139
    %v231 = vpop.f32.mrb[0].mxu0
    %v232 = vadd.f32 %v163, %v231
    %v233 = vpop.f32.mrb[0].mxu0
    %234 = vdwg.mxu0
    %v235 = vtanh.pop %v232
    %s236 = scalar_lea.vmem [#allocation2], 128
    %v237 = vld [vmem:[%s236] sm:$0xff]
    %v238 = vld [vmem:[%s236 + $0x8] sm:$0xff]
    %v239 = vld [vmem:[%s236 + $0x10] sm:$0xff]
    %v240 = vld [vmem:[%s236 + $0x18] sm:$0xff]
    %v241 = vld [vmem:[%s236 + $0x20] sm:$0xff]
    %v242 = vld [vmem:[%s236 + $0x28] sm:$0xff]
    %v243 = vld [vmem:[%s236 + $0x30] sm:$0xff]
    %v244 = vld [vmem:[%s236 + $0x38] sm:$0xff]
    %v245 = vld [vmem:[%s236 + $0x40] sm:$0xff]
    %v246 = vld [vmem:[%s236 + $0x48] sm:$0xff]
    %v247 = vld [vmem:[%s236 + $0x50] sm:$0xff]
    %v248 = vld [vmem:[%s236 + $0x58] sm:$0xff]
    %v249 = vld [vmem:[%s236 + $0x60] sm:$0xff]
    %v250 = vld [vmem:[%s236 + $0x68] sm:$0xff]
    %v251 = vld [vmem:[%s236 + $0x70] sm:$0xff]
    %v252 = vld [vmem:[%s236 + $0x78] sm:$0xff]
    %s253 = scalar_lea.vmem %s4, 1
    %v254 = vld [vmem:[%s253] sm:$0x1]
    %v256 = vlaneseq
    %v257 = vshrl.u32 %v256, 7
    %v258 = vsub.s32 0, %v257
    %v259 = vrot.slane %v254, %v258
    %261 = vmatprep.subr.mxu0 0.0
    %262 = vmatpush1.msra.mxu0 %v237
    %263 = vmatprep.subr.mxu0 0.0
    %264 = vmatpush1.msra.mxu0 %v238
    %265 = vmatprep.subr.mxu0 0.0
    %266 = vmatpush1.msra.mxu0 %v239
    %267 = vmatprep.subr.mxu0 0.0
    %268 = vmatpush1.msra.mxu0 %v240
    %269 = vmatprep.subr.mxu0 0.0
    %270 = vmatpush1.msra.mxu0 %v241
    %271 = vmatprep.subr.mxu0 0.0
    %272 = vmatpush1.msra.mxu0 %v242
    %273 = vmatprep.subr.mxu0 0.0
    %274 = vmatpush1.msra.mxu0 %v243
    %275 = vmatprep.subr.mxu0 0.0
    %276 = vmatpush1.msra.mxu0 %v244
    %277 = vmatprep.subr.mxu0 0.0
    %278 = vmatpush1.msra.mxu0 %v245
    %279 = vmatprep.subr.mxu0 0.0
    %280 = vmatpush1.msra.mxu0 %v246
    %281 = vmatprep.subr.mxu0 0.0
    %282 = vmatpush1.msra.mxu0 %v247
    %283 = vmatprep.subr.mxu0 0.0
    %284 = vmatpush1.msra.mxu0 %v248
    %285 = vmatprep.subr.mxu0 0.0
    %286 = vmatpush1.msra.mxu0 %v249
    %287 = vmatprep.subr.mxu0 0.0
    %288 = vmatpush1.msra.mxu0 %v250
    %289 = vmatprep.subr.mxu0 0.0
    %290 = vmatpush1.msra.mxu0 %v251
    %291 = vmatprep.subr.mxu0 0.0
    %292 = vmatpush1.msra.mxu0 %v252
    %293 = vmatprep.subr.mxu0 0.0
    %294 = vmatpush1.msra.mxu0 0.0
    %295 = vmatprep.subr.mxu0 0.0
    %296 = vmatpush1.msra.mxu0 0.0
    %297 = vmatprep.subr.mxu0 0.0
    %298 = vmatpush1.msra.mxu0 0.0
    %299 = vmatprep.subr.mxu0 0.0
    %300 = vmatpush1.msra.mxu0 0.0
    %301 = vmatprep.subr.mxu0 0.0
    %302 = vmatpush1.msra.mxu0 0.0
    %303 = vmatprep.subr.mxu0 0.0
    %304 = vmatpush1.msra.mxu0 0.0
    %305 = vmatprep.subr.mxu0 0.0
    %306 = vmatpush1.msra.mxu0 0.0
    %307 = vmatprep.subr.mxu0 0.0
    %308 = vmatpush1.msra.mxu0 0.0
    %309 = vmatprep.subr.mxu0 0.0
    %310 = vmatpush1.msra.mxu0 0.0
    %311 = vmatprep.subr.mxu0 0.0
    %312 = vmatpush1.msra.mxu0 0.0
    %313 = vmatprep.subr.mxu0 0.0
    %314 = vmatpush1.msra.mxu0 0.0
    %315 = vmatprep.subr.mxu0 0.0
    %316 = vmatpush1.msra.mxu0 0.0
    %317 = vmatprep.subr.mxu0 0.0
    %318 = vmatpush1.msra.mxu0 0.0
    %319 = vmatprep.subr.mxu0 0.0
    %320 = vmatpush1.msra.mxu0 0.0
    %321 = vmatprep.subr.mxu0 0.0
    %322 = vmatpush1.msra.mxu0 0.0
    %323 = vmatprep.subr.mxu0 0.0
    %324 = vmatpush1.msra.mxu0 0.0
    %325 = vmatprep.mubr.f32.mxu0 0.0
    %326 = vmatmul.mubr.f32.gmra.mrb[0].mxu0 %v235
    %v327 = vpop.f32.mrb[0].mxu0
    %v328 = vadd.f32 %v259, %v327
    %v329 = vpop.f32.mrb[0].mxu0
    %330 = vdwg.mxu0
    %v331 = vtanh.pop %v328
    %v332 = vld [vmem:[#allocation5] sm:$0xff]
    %v333 = vld [vmem:[#allocation5 + $0x8] sm:$0xff]
    %v334 = vld [vmem:[#allocation5 + $0x10] sm:$0xff]
    %v335 = vld [vmem:[#allocation5 + $0x18] sm:$0xff]
    %v336 = vld [vmem:[#allocation5 + $0x20] sm:$0xff]
    %v337 = vld [vmem:[#allocation5 + $0x28] sm:$0xff]
    %v338 = vld [vmem:[#allocation5 + $0x30] sm:$0xff]
    %v339 = vld [vmem:[#allocation5 + $0x38] sm:$0xff]
    %v340 = vld [vmem:[#allocation5 + $0x40] sm:$0xff]
    %v341 = vld [vmem:[#allocation5 + $0x48] sm:$0xff]
    %v342 = vld [vmem:[#allocation5 + $0x50] sm:$0xff]
    %v343 = vld [vmem:[#allocation5 + $0x58] sm:$0xff]
    %v344 = vld [vmem:[#allocation5 + $0x60] sm:$0xff]
    %v345 = vld [vmem:[#allocation5 + $0x68] sm:$0xff]
    %v346 = vld [vmem:[#allocation5 + $0x70] sm:$0xff]
    %v347 = vld [vmem:[#allocation5 + $0x78] sm:$0xff]
    %v348 = vld [vmem:[%s6] sm:$0x1]
    %v350 = vlaneseq
    %v351 = vshrl.u32 %v350, 7
    %v352 = vsub.s32 0, %v351
    %v353 = vrot.slane %v348, %v352
    %355 = vmatprep.subr.mxu0 0.0
    %356 = vmatpush1.msra.mxu0 %v332
    %357 = vmatprep.subr.mxu0 0.0
    %358 = vmatpush1.msra.mxu0 %v333
    %359 = vmatprep.subr.mxu0 0.0
    %360 = vmatpush1.msra.mxu0 %v334
    %361 = vmatprep.subr.mxu0 0.0
    %362 = vmatpush1.msra.mxu0 %v335
    %363 = vmatprep.subr.mxu0 0.0
    %364 = vmatpush1.msra.mxu0 %v336
    %365 = vmatprep.subr.mxu0 0.0
    %366 = vmatpush1.msra.mxu0 %v337
    %367 = vmatprep.subr.mxu0 0.0
    %368 = vmatpush1.msra.mxu0 %v338
    %369 = vmatprep.subr.mxu0 0.0
    %370 = vmatpush1.msra.mxu0 %v339
    %371 = vmatprep.subr.mxu0 0.0
    %372 = vmatpush1.msra.mxu0 %v340
    %373 = vmatprep.subr.mxu0 0.0
    %374 = vmatpush1.msra.mxu0 %v341
    %375 = vmatprep.subr.mxu0 0.0
    %376 = vmatpush1.msra.mxu0 %v342
    %377 = vmatprep.subr.mxu0 0.0
    %378 = vmatpush1.msra.mxu0 %v343
    %379 = vmatprep.subr.mxu0 0.0
    %380 = vmatpush1.msra.mxu0 %v344
    %381 = vmatprep.subr.mxu0 0.0
    %382 = vmatpush1.msra.mxu0 %v345
    %383 = vmatprep.subr.mxu0 0.0
    %384 = vmatpush1.msra.mxu0 %v346
    %385 = vmatprep.subr.mxu0 0.0
    %386 = vmatpush1.msra.mxu0 %v347
    %387 = vmatprep.subr.mxu0 0.0
    %388 = vmatpush1.msra.mxu0 0.0
    %389 = vmatprep.subr.mxu0 0.0
    %390 = vmatpush1.msra.mxu0 0.0
    %391 = vmatprep.subr.mxu0 0.0
    %392 = vmatpush1.msra.mxu0 0.0
    %393 = vmatprep.subr.mxu0 0.0
    %394 = vmatpush1.msra.mxu0 0.0
    %395 = vmatprep.subr.mxu0 0.0
    %396 = vmatpush1.msra.mxu0 0.0
    %397 = vmatprep.subr.mxu0 0.0
    %398 = vmatpush1.msra.mxu0 0.0
    %399 = vmatprep.subr.mxu0 0.0
    %400 = vmatpush1.msra.mxu0 0.0
    %401 = vmatprep.subr.mxu0 0.0
    %402 = vmatpush1.msra.mxu0 0.0
    %403 = vmatprep.subr.mxu0 0.0
    %404 = vmatpush1.msra.mxu0 0.0
    %405 = vmatprep.subr.mxu0 0.0
    %406 = vmatpush1.msra.mxu0 0.0
    %407 = vmatprep.subr.mxu0 0.0
    %408 = vmatpush1.msra.mxu0 0.0
    %409 = vmatprep.subr.mxu0 0.0
    %410 = vmatpush1.msra.mxu0 0.0
    %411 = vmatprep.subr.mxu0 0.0
    %412 = vmatpush1.msra.mxu0 0.0
    %413 = vmatprep.subr.mxu0 0.0
    %414 = vmatpush1.msra.mxu0 0.0
    %415 = vmatprep.subr.mxu0 0.0
    %416 = vmatpush1.msra.mxu0 0.0
    %417 = vmatprep.subr.mxu0 0.0
    %418 = vmatpush1.msra.mxu0 0.0
    %419 = vmatprep.mubr.f32.mxu0 0.0
    %420 = vmatmul.mubr.f32.gmra.mrb[0].mxu0 %v331
    %v421 = vpop.f32.mrb[0].mxu0
    %v422 = vadd.f32 %v353, %v421
    %v423 = vpop.f32.mrb[0].mxu0
    %424 = vdwg.mxu0
    %425 = vst [vmem:[#allocation7] sm:$0xff] %v422
    // Predicated region
    $region38: #{tpu_custom_call.1} parent=1 // pred_check
      _
    $region39: #{tpu_custom_call.1} parent=1 // pred_check_branch
      %427 = sbr.rel (0) target = $region41
    $region40: #{tpu_custom_call.1} parent=1 // pred_region
      %s429 = ssub.s32 128, 128
      %430 = vsyncadd [#allocation4], %s429
      %s432 = sshll.u32 [#allocation7], 4
      %s433 = int_to_ptr.vmem [resolvable:$true] %s432
      %435 = dma.vmem_to_hbm [thread:$0]  %s433, 128, %s7, [#allocation4]
    $region41: #{tpu_custom_call.1} parent=1 // pred_fallthru
      _
    // Predicated region
    $region42: #{tpu_custom_call.1} parent=1 // pred_check
      _
    $region43: #{tpu_custom_call.1} parent=1 // pred_check_branch
      %437 = sbr.rel (0) target = $region45
    $region44: #{tpu_custom_call.1} parent=1 // pred_region
      %438 = dma.done [#allocation4], 128
    $region45: #{tpu_custom_call.1} parent=1 // pred_fallthru
      _
    %439 = vsyncpa [#allocation3], 1
    %440 = vsyncpa [#allocation6], 1
    %441 = vsyncpa [#allocation4], 1

// kernel: tpu_custom_call.1
$region0: #{tpu_custom_call.1}
  #allocation0 [shape = 'u32[]', space=smem, size = 0x4, offset = 0x4, fixed_abs, tag = 'smem constant byte address 0x4 - core index']
  #allocation1 [shape = 'u32[144,128]{1,0:T(1,128)}', space=vmem, size = 0x12000, scoped, tag = 'internal scratch']
  %s0 = inlined_call_operand.vmem [shape: f32[8,4], index: 0, kind: input, shape index: {}]
  %s1 = inlined_call_operand.vmem [shape: f32[4,128], index: 1, kind: input, shape index: {}]
  %s2 = inlined_call_operand.vmem [shape: f32[1,128], index: 2, kind: input, shape index: {}]
  %s3 = inlined_call_operand.hbm [shape: f32[2,128,128], index: 3, kind: input, shape index: {}]
  %s4 = inlined_call_operand.vmem [shape: f32[2,1,128], index: 4, kind: input, shape index: {}]
  %s5 = inlined_call_operand.hbm [shape: f32[128,128], index: 5, kind: input, shape index: {}]
  %s6 = inlined_call_operand.vmem [shape: f32[1,128], index: 6, kind: input, shape index: {}]
  %s7 = inlined_call_operand.hbm [shape: f32[8,128], index: 7, kind: output, shape index: {}]
  %s8 = sld [smem:[#allocation0]]
  $region46: #{tpu_custom_call.1} parent=0
    _
  %s10 = ssub.s32 1, %s8
  %s11 = scalar_select 0, %s10, %s8
  $region1: #{tpu_custom_call.1} parent=0
    #allocation2 [shape = 'u8[131072]{0}', space=vmem, size = 0x20000, scoped, tag = 'input window, operand 3, single buffered']
    #allocation3 [shape = 's32[1]{0}', space=sflag, size = 0x4, scoped, tag = 'scoped memory for tpu_custom_call.1']
    #allocation4 [shape = 's32[1]{0}', space=sflag, size = 0x4, scoped, tag = 'scoped memory for tpu_custom_call.1']
    #allocation5 [shape = 'u8[65536]{0}', space=vmem, size = 0x10000, scoped, tag = 'input window, operand 5, single buffered']
    #allocation6 [shape = 's32[1]{0}', space=sflag, size = 0x4, scoped, tag = 'scoped memory for tpu_custom_call.1']
    #allocation7 [shape = 'u8[4096]{0}', space=vmem, size = 0x1000, scoped, tag = 'output window, operand 0, single buffered']
    %12 = vsyncpa [#allocation3], 0
    %13 = vsyncpa [#allocation6], 0
    %14 = vsyncpa [#allocation4], 0
    // Predicated region
    $region2: #{tpu_custom_call.1} parent=1 // pred_check
      _
    $region3: #{tpu_custom_call.1} parent=1 // pred_check_branch
      %16 = sbr.rel (0) target = $region5
    $region4: #{tpu_custom_call.1} parent=1 // pred_region
      _
    $region5: #{tpu_custom_call.1} parent=1 // pred_fallthru
      _
    // Predicated region
    $region6: #{tpu_custom_call.1} parent=1 // pred_check
      _
    $region7: #{tpu_custom_call.1} parent=1 // pred_check_branch
      %18 = sbr.rel (0) target = $region9
    $region8: #{tpu_custom_call.1} parent=1 // pred_region
      _
    $region9: #{tpu_custom_call.1} parent=1 // pred_fallthru
      _
    // Predicated region
    $region10: #{tpu_custom_call.1} parent=1 // pred_check
      _
    $region11: #{tpu_custom_call.1} parent=1 // pred_check_branch
      %20 = sbr.rel (0) target = $region13
    $region12: #{tpu_custom_call.1} parent=1 // pred_region
      _
    $region13: #{tpu_custom_call.1} parent=1 // pred_fallthru
      _
    // Predicated region
    $region14: #{tpu_custom_call.1} parent=1 // pred_check
      _
    $region15: #{tpu_custom_call.1} parent=1 // pred_check_branch
      %22 = sbr.rel (0) target = $region17
    $region16: #{tpu_custom_call.1} parent=1 // pred_region
      %s24 = ssub.s32 4096, 4096
      %25 = vsyncadd [#allocation3], %s24
      %s26 = sshll.u32 [#allocation2], 4
      %s27 = int_to_ptr.vmem [resolvable:$true] %s26
      %32 = dma.hbm_to_vmem [thread:$0]  %s3, 4096, %s27, [#allocation3], 128, 128, 8
    $region17: #{tpu_custom_call.1} parent=1 // pred_fallthru
      _
    // Predicated region
    $region18: #{tpu_custom_call.1} parent=1 // pred_check
      _
    $region19: #{tpu_custom_call.1} parent=1 // pred_check_branch
      %34 = sbr.rel (0) target = $region21
    $region20: #{tpu_custom_call.1} parent=1 // pred_region
      _
    $region21: #{tpu_custom_call.1} parent=1 // pred_fallthru
      _
    // Predicated region
    $region22: #{tpu_custom_call.1} parent=1 // pred_check
      _
    $region23: #{tpu_custom_call.1} parent=1 // pred_check_branch
      %36 = sbr.rel (0) target = $region25
    $region24: #{tpu_custom_call.1} parent=1 // pred_region
      %s38 = ssub.s32 2048, 2048
      %39 = vsyncadd [#allocation6], %s38
      %s40 = sshll.u32 [#allocation5], 4
      %s41 = int_to_ptr.vmem [resolvable:$true] %s40
      %46 = dma.hbm_to_vmem [thread:$0]  %s5, 2048, %s41, [#allocation6], 128, 128, 8
    $region25: #{tpu_custom_call.1} parent=1 // pred_fallthru
      _
    // Predicated region
    $region26: #{tpu_custom_call.1} parent=1 // pred_check
      _
    $region27: #{tpu_custom_call.1} parent=1 // pred_check_branch
      %48 = sbr.rel (0) target = $region29
    $region28: #{tpu_custom_call.1} parent=1 // pred_region
      _
    $region29: #{tpu_custom_call.1} parent=1 // pred_fallthru
      _
    // Predicated region
    $region30: #{tpu_custom_call.1} parent=1 // pred_check
      _
    $region31: #{tpu_custom_call.1} parent=1 // pred_check_branch
      %50 = sbr.rel (0) target = $region33
    $region32: #{tpu_custom_call.1} parent=1 // pred_region
      %51 = dma.done [#allocation3], 4096
    $region33: #{tpu_custom_call.1} parent=1 // pred_fallthru
      _
    // Predicated region
    $region34: #{tpu_custom_call.1} parent=1 // pred_check
      _
    $region35: #{tpu_custom_call.1} parent=1 // pred_check_branch
      %53 = sbr.rel (0) target = $region37
    $region36: #{tpu_custom_call.1} parent=1 // pred_region
      %54 = dma.done [#allocation6], 2048
    $region37: #{tpu_custom_call.1} parent=1 // pred_fallthru
      _
    %v55 = vld [vmem:[%s0] sm:$0xff]
    %v56 = vld [vmem:[%s1] sm:$0xf]
    %v57 = vld [vmem:[%s2] sm:$0x1]
    %v59 = vlaneseq
    %v60 = vshrl.u32 %v59, 7
    %v61 = vsub.s32 0, %v60
    %v62 = vrot.slane %v57, %v61
    %vm64 = vcmask 31744
    %v66 = vsel %vm64, %v55, 0
    %vm68 = vcmask 1043456
    %v70 = vsel %vm68, %v56, 0
    %72 = vmatprep.subr.mxu0 0.0
    %73 = vmatpush1.msra.mxu0 %v70
    %74 = vmatprep.subr.mxu0 0.0
    %75 = vmatpush1.msra.mxu0 0.0
    %76 = vmatprep.subr.mxu0 0.0
    %77 = vmatpush1.msra.mxu0 0.0
    %78 = vmatprep.subr.mxu0 0.0
    %79 = vmatpush1.msra.mxu0 0.0
    %80 = vmatprep.subr.mxu0 0.0
    %81 = vmatpush1.msra.mxu0 0.0
    %82 = vmatprep.subr.mxu0 0.0
    %83 = vmatpush1.msra.mxu0 0.0
    %84 = vmatprep.subr.mxu0 0.0
    %85 = vmatpush1.msra.mxu0 0.0
    %86 = vmatprep.subr.mxu0 0.0
    %87 = vmatpush1.msra.mxu0 0.0
    %88 = vmatprep.subr.mxu0 0.0
    %89 = vmatpush1.msra.mxu0 0.0
    %90 = vmatprep.subr.mxu0 0.0
    %91 = vmatpush1.msra.mxu0 0.0
    %92 = vmatprep.subr.mxu0 0.0
    %93 = vmatpush1.msra.mxu0 0.0
    %94 = vmatprep.subr.mxu0 0.0
    %95 = vmatpush1.msra.mxu0 0.0
    %96 = vmatprep.subr.mxu0 0.0
    %97 = vmatpush1.msra.mxu0 0.0
    %98 = vmatprep.subr.mxu0 0.0
    %99 = vmatpush1.msra.mxu0 0.0
    %100 = vmatprep.subr.mxu0 0.0
    %101 = vmatpush1.msra.mxu0 0.0
    %102 = vmatprep.subr.mxu0 0.0
    %103 = vmatpush1.msra.mxu0 0.0
    %104 = vmatprep.subr.mxu0 0.0
    %105 = vmatpush1.msra.mxu0 0.0
    %106 = vmatprep.subr.mxu0 0.0
    %107 = vmatpush1.msra.mxu0 0.0
    %108 = vmatprep.subr.mxu0 0.0
    %109 = vmatpush1.msra.mxu0 0.0
    %110 = vmatprep.subr.mxu0 0.0
    %111 = vmatpush1.msra.mxu0 0.0
    %112 = vmatprep.subr.mxu0 0.0
    %113 = vmatpush1.msra.mxu0 0.0
    %114 = vmatprep.subr.mxu0 0.0
    %115 = vmatpush1.msra.mxu0 0.0
    %116 = vmatprep.subr.mxu0 0.0
    %117 = vmatpush1.msra.mxu0 0.0
    %118 = vmatprep.subr.mxu0 0.0
    %119 = vmatpush1.msra.mxu0 0.0
    %120 = vmatprep.subr.mxu0 0.0
    %121 = vmatpush1.msra.mxu0 0.0
    %122 = vmatprep.subr.mxu0 0.0
    %123 = vmatpush1.msra.mxu0 0.0
    %124 = vmatprep.subr.mxu0 0.0
    %125 = vmatpush1.msra.mxu0 0.0
    %126 = vmatprep.subr.mxu0 0.0
    %127 = vmatpush1.msra.mxu0 0.0
    %128 = vmatprep.subr.mxu0 0.0
    %129 = vmatpush1.msra.mxu0 0.0
    %130 = vmatprep.subr.mxu0 0.0
    %131 = vmatpush1.msra.mxu0 0.0
    %132 = vmatprep.subr.mxu0 0.0
    %133 = vmatpush1.msra.mxu0 0.0
    %134 = vmatprep.subr.mxu0 0.0
    %135 = vmatpush1.msra.mxu0 0.0
    %136 = vmatprep.mubr.f32.mxu0 0.0
    %137 = vmatmul.mubr.f32.gmra.mrb[0].mxu0 %v66
    %v138 = vpop.f32.mrb[0].mxu0
    %v139 = vadd.f32 %v62, %v138
    %v140 = vpop.f32.mrb[0].mxu0
    %141 = vdwg.mxu0
    %v142 = vld [vmem:[#allocation2] sm:$0xff]
    %v143 = vld [vmem:[#allocation2 + $0x8] sm:$0xff]
    %v144 = vld [vmem:[#allocation2 + $0x10] sm:$0xff]
    %v145 = vld [vmem:[#allocation2 + $0x18] sm:$0xff]
    %v146 = vld [vmem:[#allocation2 + $0x20] sm:$0xff]
    %v147 = vld [vmem:[#allocation2 + $0x28] sm:$0xff]
    %v148 = vld [vmem:[#allocation2 + $0x30] sm:$0xff]
    %v149 = vld [vmem:[#allocation2 + $0x38] sm:$0xff]
    %v150 = vld [vmem:[#allocation2 + $0x40] sm:$0xff]
    %v151 = vld [vmem:[#allocation2 + $0x48] sm:$0xff]
    %v152 = vld [vmem:[#allocation2 + $0x50] sm:$0xff]
    %v153 = vld [vmem:[#allocation2 + $0x58] sm:$0xff]
    %v154 = vld [vmem:[#allocation2 + $0x60] sm:$0xff]
    %v155 = vld [vmem:[#allocation2 + $0x68] sm:$0xff]
    %v156 = vld [vmem:[#allocation2 + $0x70] sm:$0xff]
    %v157 = vld [vmem:[#allocation2 + $0x78] sm:$0xff]
    %v158 = vld [vmem:[%s4] sm:$0x1]
    %v160 = vlaneseq
    %v161 = vshrl.u32 %v160, 7
    %v162 = vsub.s32 0, %v161
    %v163 = vrot.slane %v158, %v162
    %165 = vmatprep.subr.mxu0 0.0
    %166 = vmatpush1.msra.mxu0 %v142
    %167 = vmatprep.subr.mxu0 0.0
    %168 = vmatpush1.msra.mxu0 %v143
    %169 = vmatprep.subr.mxu0 0.0
    %170 = vmatpush1.msra.mxu0 %v144
    %171 = vmatprep.subr.mxu0 0.0
    %172 = vmatpush1.msra.mxu0 %v145
    %173 = vmatprep.subr.mxu0 0.0
    %174 = vmatpush1.msra.mxu0 %v146
    %175 = vmatprep.subr.mxu0 0.0
    %176 = vmatpush1.msra.mxu0 %v147
    %177 = vmatprep.subr.mxu0 0.0
    %178 = vmatpush1.msra.mxu0 %v148
    %179 = vmatprep.subr.mxu0 0.0
    %180 = vmatpush1.msra.mxu0 %v149
    %181 = vmatprep.subr.mxu0 0.0
    %182 = vmatpush1.msra.mxu0 %v150
    %183 = vmatprep.subr.mxu0 0.0
    %184 = vmatpush1.msra.mxu0 %v151
    %185 = vmatprep.subr.mxu0 0.0
    %186 = vmatpush1.msra.mxu0 %v152
    %187 = vmatprep.subr.mxu0 0.0
    %188 = vmatpush1.msra.mxu0 %v153
    %189 = vmatprep.subr.mxu0 0.0
    %190 = vmatpush1.msra.mxu0 %v154
    %191 = vmatprep.subr.mxu0 0.0
    %192 = vmatpush1.msra.mxu0 %v155
    %193 = vmatprep.subr.mxu0 0.0
    %194 = vmatpush1.msra.mxu0 %v156
    %195 = vmatprep.subr.mxu0 0.0
    %196 = vmatpush1.msra.mxu0 %v157
    %197 = vmatprep.subr.mxu0 0.0
    %198 = vmatpush1.msra.mxu0 0.0
    %199 = vmatprep.subr.mxu0 0.0
    %200 = vmatpush1.msra.mxu0 0.0
    %201 = vmatprep.subr.mxu0 0.0
    %202 = vmatpush1.msra.mxu0 0.0
    %203 = vmatprep.subr.mxu0 0.0
    %204 = vmatpush1.msra.mxu0 0.0
    %205 = vmatprep.subr.mxu0 0.0
    %206 = vmatpush1.msra.mxu0 0.0
    %207 = vmatprep.subr.mxu0 0.0
    %208 = vmatpush1.msra.mxu0 0.0
    %209 = vmatprep.subr.mxu0 0.0
    %210 = vmatpush1.msra.mxu0 0.0
    %211 = vmatprep.subr.mxu0 0.0
    %212 = vmatpush1.msra.mxu0 0.0
    %213 = vmatprep.subr.mxu0 0.0
    %214 = vmatpush1.msra.mxu0 0.0
    %215 = vmatprep.subr.mxu0 0.0
    %216 = vmatpush1.msra.mxu0 0.0
    %217 = vmatprep.subr.mxu0 0.0
    %218 = vmatpush1.msra.mxu0 0.0
    %219 = vmatprep.subr.mxu0 0.0
    %220 = vmatpush1.msra.mxu0 0.0
    %221 = vmatprep.subr.mxu0 0.0
    %222 = vmatpush1.msra.mxu0 0.0
    %223 = vmatprep.subr.mxu0 0.0
    %224 = vmatpush1.msra.mxu0 0.0
    %225 = vmatprep.subr.mxu0 0.0
    %226 = vmatpush1.msra.mxu0 0.0
    %227 = vmatprep.subr.mxu0 0.0
    %228 = vmatpush1.msra.mxu0 0.0
    %229 = vmatprep.mubr.f32.mxu0 0.0
    %230 = vmatmul.mubr.f32.gmra.mrb[0].mxu0 %v139
    %v231 = vpop.f32.mrb[0].mxu0
    %v232 = vadd.f32 %v163, %v231
    %v233 = vpop.f32.mrb[0].mxu0
    %234 = vdwg.mxu0
    %v235 = vtanh.pop %v232
    %s236 = scalar_lea.vmem [#allocation2], 128
    %v237 = vld [vmem:[%s236] sm:$0xff]
    %v238 = vld [vmem:[%s236 + $0x8] sm:$0xff]
    %v239 = vld [vmem:[%s236 + $0x10] sm:$0xff]
    %v240 = vld [vmem:[%s236 + $0x18] sm:$0xff]
    %v241 = vld [vmem:[%s236 + $0x20] sm:$0xff]
    %v242 = vld [vmem:[%s236 + $0x28] sm:$0xff]
    %v243 = vld [vmem:[%s236 + $0x30] sm:$0xff]
    %v244 = vld [vmem:[%s236 + $0x38] sm:$0xff]
    %v245 = vld [vmem:[%s236 + $0x40] sm:$0xff]
    %v246 = vld [vmem:[%s236 + $0x48] sm:$0xff]
    %v247 = vld [vmem:[%s236 + $0x50] sm:$0xff]
    %v248 = vld [vmem:[%s236 + $0x58] sm:$0xff]
    %v249 = vld [vmem:[%s236 + $0x60] sm:$0xff]
    %v250 = vld [vmem:[%s236 + $0x68] sm:$0xff]
    %v251 = vld [vmem:[%s236 + $0x70] sm:$0xff]
    %v252 = vld [vmem:[%s236 + $0x78] sm:$0xff]
    %s253 = scalar_lea.vmem %s4, 1
    %v254 = vld [vmem:[%s253] sm:$0x1]
    %v256 = vlaneseq
    %v257 = vshrl.u32 %v256, 7
    %v258 = vsub.s32 0, %v257
    %v259 = vrot.slane %v254, %v258
    %261 = vmatprep.subr.mxu0 0.0
    %262 = vmatpush1.msra.mxu0 %v237
    %263 = vmatprep.subr.mxu0 0.0
    %264 = vmatpush1.msra.mxu0 %v238
    %265 = vmatprep.subr.mxu0 0.0
    %266 = vmatpush1.msra.mxu0 %v239
    %267 = vmatprep.subr.mxu0 0.0
    %268 = vmatpush1.msra.mxu0 %v240
    %269 = vmatprep.subr.mxu0 0.0
    %270 = vmatpush1.msra.mxu0 %v241
    %271 = vmatprep.subr.mxu0 0.0
    %272 = vmatpush1.msra.mxu0 %v242
    %273 = vmatprep.subr.mxu0 0.0
    %274 = vmatpush1.msra.mxu0 %v243
    %275 = vmatprep.subr.mxu0 0.0
    %276 = vmatpush1.msra.mxu0 %v244
    %277 = vmatprep.subr.mxu0 0.0
    %278 = vmatpush1.msra.mxu0 %v245
    %279 = vmatprep.subr.mxu0 0.0
    %280 = vmatpush1.msra.mxu0 %v246
    %281 = vmatprep.subr.mxu0 0.0
    %282 = vmatpush1.msra.mxu0 %v247
    %283 = vmatprep.subr.mxu0 0.0
    %284 = vmatpush1.msra.mxu0 %v248
    %285 = vmatprep.subr.mxu0 0.0
    %286 = vmatpush1.msra.mxu0 %v249
    %287 = vmatprep.subr.mxu0 0.0
    %288 = vmatpush1.msra.mxu0 %v250
    %289 = vmatprep.subr.mxu0 0.0
    %290 = vmatpush1.msra.mxu0 %v251
    %291 = vmatprep.subr.mxu0 0.0
    %292 = vmatpush1.msra.mxu0 %v252
    %293 = vmatprep.subr.mxu0 0.0
    %294 = vmatpush1.msra.mxu0 0.0
    %295 = vmatprep.subr.mxu0 0.0
    %296 = vmatpush1.msra.mxu0 0.0
    %297 = vmatprep.subr.mxu0 0.0
    %298 = vmatpush1.msra.mxu0 0.0
    %299 = vmatprep.subr.mxu0 0.0
    %300 = vmatpush1.msra.mxu0 0.0
    %301 = vmatprep.subr.mxu0 0.0
    %302 = vmatpush1.msra.mxu0 0.0
    %303 = vmatprep.subr.mxu0 0.0
    %304 = vmatpush1.msra.mxu0 0.0
    %305 = vmatprep.subr.mxu0 0.0
    %306 = vmatpush1.msra.mxu0 0.0
    %307 = vmatprep.subr.mxu0 0.0
    %308 = vmatpush1.msra.mxu0 0.0
    %309 = vmatprep.subr.mxu0 0.0
    %310 = vmatpush1.msra.mxu0 0.0
    %311 = vmatprep.subr.mxu0 0.0
    %312 = vmatpush1.msra.mxu0 0.0
    %313 = vmatprep.subr.mxu0 0.0
    %314 = vmatpush1.msra.mxu0 0.0
    %315 = vmatprep.subr.mxu0 0.0
    %316 = vmatpush1.msra.mxu0 0.0
    %317 = vmatprep.subr.mxu0 0.0
    %318 = vmatpush1.msra.mxu0 0.0
    %319 = vmatprep.subr.mxu0 0.0
    %320 = vmatpush1.msra.mxu0 0.0
    %321 = vmatprep.subr.mxu0 0.0
    %322 = vmatpush1.msra.mxu0 0.0
    %323 = vmatprep.subr.mxu0 0.0
    %324 = vmatpush1.msra.mxu0 0.0
    %325 = vmatprep.mubr.f32.mxu0 0.0
    %326 = vmatmul.mubr.f32.gmra.mrb[0].mxu0 %v235
    %v327 = vpop.f32.mrb[0].mxu0
    %v328 = vadd.f32 %v259, %v327
    %v329 = vpop.f32.mrb[0].mxu0
    %330 = vdwg.mxu0
    %v331 = vtanh.pop %v328
    %v332 = vld [vmem:[#allocation5] sm:$0xff]
    %v333 = vld [vmem:[#allocation5 + $0x8] sm:$0xff]
    %v334 = vld [vmem:[#allocation5 + $0x10] sm:$0xff]
    %v335 = vld [vmem:[#allocation5 + $0x18] sm:$0xff]
    %v336 = vld [vmem:[#allocation5 + $0x20] sm:$0xff]
    %v337 = vld [vmem:[#allocation5 + $0x28] sm:$0xff]
    %v338 = vld [vmem:[#allocation5 + $0x30] sm:$0xff]
    %v339 = vld [vmem:[#allocation5 + $0x38] sm:$0xff]
    %v340 = vld [vmem:[#allocation5 + $0x40] sm:$0xff]
    %v341 = vld [vmem:[#allocation5 + $0x48] sm:$0xff]
    %v342 = vld [vmem:[#allocation5 + $0x50] sm:$0xff]
    %v343 = vld [vmem:[#allocation5 + $0x58] sm:$0xff]
    %v344 = vld [vmem:[#allocation5 + $0x60] sm:$0xff]
    %v345 = vld [vmem:[#allocation5 + $0x68] sm:$0xff]
    %v346 = vld [vmem:[#allocation5 + $0x70] sm:$0xff]
    %v347 = vld [vmem:[#allocation5 + $0x78] sm:$0xff]
    %v348 = vld [vmem:[%s6] sm:$0x1]
    %v350 = vlaneseq
    %v351 = vshrl.u32 %v350, 7
    %v352 = vsub.s32 0, %v351
    %v353 = vrot.slane %v348, %v352
    %355 = vmatprep.subr.mxu0 0.0
    %356 = vmatpush1.msra.mxu0 %v332
    %357 = vmatprep.subr.mxu0 0.0
    %358 = vmatpush1.msra.mxu0 %v333
    %359 = vmatprep.subr.mxu0 0.0
    %360 = vmatpush1.msra.mxu0 %v334
    %361 = vmatprep.subr.mxu0 0.0
    %362 = vmatpush1.msra.mxu0 %v335
    %363 = vmatprep.subr.mxu0 0.0
    %364 = vmatpush1.msra.mxu0 %v336
    %365 = vmatprep.subr.mxu0 0.0
    %366 = vmatpush1.msra.mxu0 %v337
    %367 = vmatprep.subr.mxu0 0.0
    %368 = vmatpush1.msra.mxu0 %v338
    %369 = vmatprep.subr.mxu0 0.0
    %370 = vmatpush1.msra.mxu0 %v339
    %371 = vmatprep.subr.mxu0 0.0
    %372 = vmatpush1.msra.mxu0 %v340
    %373 = vmatprep.subr.mxu0 0.0
    %374 = vmatpush1.msra.mxu0 %v341
    %375 = vmatprep.subr.mxu0 0.0
    %376 = vmatpush1.msra.mxu0 %v342
    %377 = vmatprep.subr.mxu0 0.0
    %378 = vmatpush1.msra.mxu0 %v343
    %379 = vmatprep.subr.mxu0 0.0
    %380 = vmatpush1.msra.mxu0 %v344
    %381 = vmatprep.subr.mxu0 0.0
    %382 = vmatpush1.msra.mxu0 %v345
    %383 = vmatprep.subr.mxu0 0.0
    %384 = vmatpush1.msra.mxu0 %v346
    %385 = vmatprep.subr.mxu0 0.0
    %386 = vmatpush1.msra.mxu0 %v347
    %387 = vmatprep.subr.mxu0 0.0
    %388 = vmatpush1.msra.mxu0 0.0
    %389 = vmatprep.subr.mxu0 0.0
    %390 = vmatpush1.msra.mxu0 0.0
    %391 = vmatprep.subr.mxu0 0.0
    %392 = vmatpush1.msra.mxu0 0.0
    %393 = vmatprep.subr.mxu0 0.0
    %394 = vmatpush1.msra.mxu0 0.0
    %395 = vmatprep.subr.mxu0 0.0
    %396 = vmatpush1.msra.mxu0 0.0
    %397 = vmatprep.subr.mxu0 0.0
    %398 = vmatpush1.msra.mxu0 0.0
    %399 = vmatprep.subr.mxu0 0.0
    %400 = vmatpush1.msra.mxu0 0.0
    %401 = vmatprep.subr.mxu0 0.0
    %402 = vmatpush1.msra.mxu0 0.0
    %403 = vmatprep.subr.mxu0 0.0
    %404 = vmatpush1.msra.mxu0 0.0
    %405 = vmatprep.subr.mxu0 0.0
    %406 = vmatpush1.msra.mxu0 0.0
    %407 = vmatprep.subr.mxu0 0.0
    %408 = vmatpush1.msra.mxu0 0.0
    %409 = vmatprep.subr.mxu0 0.0
    %410 = vmatpush1.msra.mxu0 0.0
    %411 = vmatprep.subr.mxu0 0.0
    %412 = vmatpush1.msra.mxu0 0.0
    %413 = vmatprep.subr.mxu0 0.0
    %414 = vmatpush1.msra.mxu0 0.0
    %415 = vmatprep.subr.mxu0 0.0
    %416 = vmatpush1.msra.mxu0 0.0
    %417 = vmatprep.subr.mxu0 0.0
    %418 = vmatpush1.msra.mxu0 0.0
    %419 = vmatprep.mubr.f32.mxu0 0.0
    %420 = vmatmul.mubr.f32.gmra.mrb[0].mxu0 %v331
    %v421 = vpop.f32.mrb[0].mxu0
    %v422 = vadd.f32 %v353, %v421
    %v423 = vpop.f32.mrb[0].mxu0
    %424 = vdwg.mxu0
    %425 = vst [vmem:[#allocation7] sm:$0xff] %v422
    // Predicated region
    $region38: #{tpu_custom_call.1} parent=1 // pred_check
      _
    $region39: #{tpu_custom_call.1} parent=1 // pred_check_branch
      %427 = sbr.rel (0) target = $region41
    $region40: #{tpu_custom_call.1} parent=1 // pred_region
      %s429 = ssub.s32 128, 128
      %430 = vsyncadd [#allocation4], %s429
      %s432 = sshll.u32 [#allocation7], 4
      %s433 = int_to_ptr.vmem [resolvable:$true] %s432
      %435 = dma.vmem_to_hbm [thread:$0]  %s433, 128, %s7, [#allocation4]
    $region41: #{tpu_custom_call.1} parent=1 // pred_fallthru
      _
    // Predicated region
    $region42: #{tpu_custom_call.1} parent=1 // pred_check
      _
    $region43: #{tpu_custom_call.1} parent=1 // pred_check_branch
      %437 = sbr.rel (0) target = $region45
    $region44: #{tpu_custom_call.1} parent=1 // pred_region
      %438 = dma.done [#allocation4], 128
    $region45: #{tpu_custom_call.1} parent=1 // pred_fallthru
      _
    %439 = vsyncpa [#allocation3], 1
    %440 = vsyncpa [#allocation6], 1
    %441 = vsyncpa [#allocation4], 1

</llo_original>
